<compile_context>
chip_gen: v7x
topology: tpu7x:2x2x1
jax: 0.10.0
libtpu: 0.0.40
codegen_flags: <defaults>
</compile_context>

<pallas_src>
import functools

import jax
import jax.numpy as jnp
from jax.experimental import pallas as pl
from jax.experimental.pallas import tpu as pltpu

_TARGET_BLOCK_ELEMS = 2 * 1024 * 1024      # ~8 MiB f32 per input block
_NUM_SPLITS = 2                            # leading "parallel" grid axis
_VMEM_LIMIT_BYTES = 48 * 1024 * 1024       # explicit (v5e default is 16 MiB)


def _mse_kernel(x_ref, t_ref, out_ref, acc_ref, *, inv_n, rows, block_rows,
                steps, num_blocks, needs_mask):
    i = pl.program_id(1)

    @pl.when(i == 0)
    def _():
        acc_ref[...] = jnp.zeros_like(acc_ref)

    d = x_ref[...].astype(jnp.float32) - t_ref[...].astype(jnp.float32)

    def accumulate(v):
        sq = v * v
        if block_rows % 8 == 0:
            # Reduce sublane-groups of the block into a small (8, cols)
            # accumulator with pure VALU adds (layout-preserving reshape).
            acc_ref[...] += sq.reshape(block_rows // 8, 8, -1).sum(axis=0)
        else:
            # Small single-block case (block_rows == rows, not a multiple
            # of 8): reduce straight to (1, cols).
            acc_ref[...] += jnp.sum(sq, axis=0, keepdims=True)

    if needs_mask:
        logical_blk = pl.program_id(0) * steps + i

        # Interior blocks are fully valid: no mask work at all.
        @pl.when(logical_blk < num_blocks - 1)
        def _():
            accumulate(d)

        # Boundary block (ragged tail) and clamped duplicate blocks: zero out
        # rows whose global row index is past the true row count.
        @pl.when(logical_blk >= num_blocks - 1)
        def _():
            row0 = logical_blk * block_rows
            ridx = row0 + jax.lax.broadcasted_iota(jnp.int32, d.shape, 0)
            accumulate(jnp.where(ridx < rows, d, 0.0))
    else:
        accumulate(d)

    @pl.when(i == pl.num_programs(1) - 1)
    def _():
        out_ref[...] = jnp.full(
            (1, 1, 1), jnp.sum(acc_ref[...]) * inv_n, jnp.float32
        )


def _choose_cols(n):
    for c in (1024, 512, 256, 128):
        if n % c == 0:
            return c
    return 0


def _content_loss_pallas(x, target):
    assert x.shape == target.shape, (x.shape, target.shape)
    n = int(x.size)
    assert n > 0

    cols = _choose_cols(n)
    if cols:
        # Free reshape (no element movement beyond any layout change XLA
        # would do anyway) -- no jnp.pad copies.
        x2 = x.reshape(n // cols, cols)
        t2 = target.reshape(n // cols, cols)
    else:
        # TODO(synk): n has no multiple-of-128 divisor; fall back to a minimal
        # zero-pad (one copy of each input). Could be removed with 1-D
        # blocking + element masking, and the constant target slab could be
        # cached once in ContentLoss.__init__ for this case.
        cols = 1024
        padded_n = -(-n // cols) * cols
        x2 = jnp.pad(x.reshape(-1), (0, padded_n - n)).reshape(-1, cols)
        t2 = jnp.pad(target.reshape(-1), (0, padded_n - n)).reshape(-1, cols)

    rows = x2.shape[0]
    target_rows = max(8, _TARGET_BLOCK_ELEMS // cols)
    # Either the whole (small) array as one block (block == full dims, always
    # a legal BlockSpec) or a big multiple-of-32 row tile.
    block_rows = rows if rows <= target_rows else target_rows
    num_blocks = -(-rows // block_rows)
    num_splits = _NUM_SPLITS if num_blocks >= _NUM_SPLITS else 1
    steps = -(-num_blocks // num_splits)
    needs_mask = (num_splits * steps * block_rows) != rows
    acc_rows = 8 if block_rows % 8 == 0 else 1

    kernel = functools.partial(
        _mse_kernel, inv_n=1.0 / float(n), rows=rows, block_rows=block_rows,
        steps=steps, num_blocks=num_blocks, needs_mask=needs_mask)

    def in_map(c, i):
        # Clamp so a (fully masked) duplicate of the last block is fetched
        # instead of an out-of-range DMA when num_splits*steps > num_blocks.
        return (jnp.minimum(c * steps + i, num_blocks - 1), 0)

    x_bytes = jnp.dtype(x.dtype).itemsize
    t_bytes = jnp.dtype(target.dtype).itemsize

    partials = pl.pallas_call(
        kernel,
        out_shape=jax.ShapeDtypeStruct((num_splits, 1, 1), jnp.float32),
        grid_spec=pltpu.PrefetchScalarGridSpec(
            num_scalar_prefetch=0,
            grid=(num_splits, steps),
            in_specs=[
                pl.BlockSpec((block_rows, cols), in_map),
                pl.BlockSpec((block_rows, cols), in_map),
            ],
            out_specs=pl.BlockSpec((1, 1, 1), lambda c, i: (c, 0, 0)),
            scratch_shapes=[pltpu.VMEM((acc_rows, cols), jnp.float32)],
        ),
        compiler_params=pltpu.CompilerParams(
            dimension_semantics=("parallel", "arbitrary"),
            vmem_limit_bytes=_VMEM_LIMIT_BYTES,
        ),
        cost_estimate=pl.CostEstimate(
            flops=3 * n,
            transcendentals=0,
            bytes_accessed=n * (x_bytes + t_bytes) + num_splits * 4,
        ),
    )(x2, t2)

    # Return float32 (don't downcast the scalar loss for low-precision inputs).
    return jnp.sum(partials)


@jax.custom_vjp
def content_loss(x, target):
    """MSE loss between x and target (same shape), mean reduction."""
    return _content_loss_pallas(x, target)


def _content_loss_fwd(x, target):
    return _content_loss_pallas(x, target), (x, target)


def _content_loss_bwd(res, g):
    x, target = res
    n = float(x.size)
    diff = x.astype(jnp.float32) - target.astype(jnp.float32)
    gx = (2.0 / n) * diff * g
    # The target cotangent is DCE'd under grad-wrt-x (target is stop_gradient'd).
    return gx.astype(x.dtype), (-gx).astype(target.dtype)


content_loss.defvjp(_content_loss_fwd, _content_loss_bwd)


class ContentLoss:
    """JAX/Pallas analogue of the PyTorch ContentLoss module."""

    def __init__(self, target):
        # .detach() equivalent: stop gradients through the target.
        self.target = jax.lax.stop_gradient(target)

    def __call__(self, x):
        return content_loss(x, self.target)


if __name__ == "__main__":
    key = jax.random.PRNGKey(0)
    kx, kt = jax.random.split(key)

    # 1) Main test: small NCHW feature map (n % 1024 == 0, single block path).
    x = jax.random.normal(kx, (2, 4, 16, 16), dtype=jnp.float32)
    target = jax.random.normal(kt, (2, 4, 16, 16), dtype=jnp.float32)

    module = ContentLoss(target)
    loss = module(x)
    jax.block_until_ready(loss)

    ref = jnp.mean((x - target) ** 2)
    assert jnp.allclose(loss, ref, rtol=1e-5, atol=1e-6), (loss, ref)

    # Backward correctness (custom_vjp analytic gradient).
    gx = jax.grad(lambda xx: content_loss(xx, target))(x)
    jax.block_until_ready(gx)
    gref = 2.0 * (x - target) / x.size
    assert jnp.allclose(gx, gref, rtol=1e-5, atol=1e-6)

    # 2) cols=256 path (n divisible by 256 but not 1024), non-multiple-of-8 rows.
    x2 = jax.random.normal(kx, (3, 5, 16, 16), dtype=jnp.float32)
    t2 = jax.random.normal(kt, (3, 5, 16, 16), dtype=jnp.float32)
    l2 = ContentLoss(t2)(x2)
    jax.block_until_ready(l2)
    assert jnp.allclose(l2, jnp.mean((x2 - t2) ** 2), rtol=1e-5, atol=1e-6)

    # 3) Multi-block path with ragged tail + clamped duplicate block (force a
    #    small block size so the masking/split logic is exercised on tiny data).
    _saved_target_elems = _TARGET_BLOCK_ELEMS
    _TARGET_BLOCK_ELEMS = 8 * 1024
    x3 = jax.random.normal(kx, (37, 1024), dtype=jnp.float32)
    t3 = jax.random.normal(kt, (37, 1024), dtype=jnp.float32)
    l3 = ContentLoss(t3)(x3)
    jax.block_until_ready(l3)
    assert jnp.allclose(l3, jnp.mean((x3 - t3) ** 2), rtol=1e-5, atol=1e-6)
    _TARGET_BLOCK_ELEMS = _saved_target_elems

    # 4) Awkward n with no multiple-of-128 divisor (minimal pad fallback).
    x4 = jax.random.normal(kx, (3, 7, 11, 13), dtype=jnp.float32)
    t4 = jax.random.normal(kt, (3, 7, 11, 13), dtype=jnp.float32)
    l4 = ContentLoss(t4)(x4)
    jax.block_until_ready(l4)
    assert jnp.allclose(l4, jnp.mean((x4 - t4) ** 2), rtol=1e-5, atol=1e-6)

    print("KERNEL_OK")
</pallas_src>

<mosaic_0001>
module attributes {stable_mosaic.version = 11 : i64} {
  func.func @_mse_kernel(%arg0: i32, %arg1: i32, %arg2: memref<2x1024xf32, #tpu.memory_space<vmem>>, %arg3: memref<2x1024xf32, #tpu.memory_space<vmem>>, %arg4: memref<1x1x1xf32, #tpu.memory_space<vmem>>, %arg5: memref<1x1024xf32, #tpu.memory_space<vmem>>) attributes {dimension_semantics = [#tpu.dimension_semantics<parallel>, #tpu.dimension_semantics<arbitrary>], iteration_bounds = array<i64: 1, 1>, scalar_prefetch = 0 : i64, scratch_operands = 1 : i64, tpu.core_type = #tpu.core_type<tc>, window_params = [{transform_indices = @transform_0, window_bounds = array<i64: 2, 1024>}, {transform_indices = @transform_1, window_bounds = array<i64: 2, 1024>}, {transform_indices = @transform_2, window_bounds = array<i64: 1, 1, 1>}]} {
    %c0_i32 = arith.constant 0 : i32
    %0 = arith.cmpi eq, %arg1, %c0_i32 : i32
    %1 = arith.extui %0 : i1 to i32
    %c0_i32_0 = arith.constant 0 : i32
    %2 = arith.cmpi ne, %1, %c0_i32_0 : i32
    scf.if %2 {
      %cst_10 = arith.constant 0.000000e+00 : f32
      %15 = vector.broadcast %cst_10 : f32 to vector<1x1024xf32>
      %c0_11 = arith.constant 0 : index
      %c0_12 = arith.constant 0 : index
      %16 = vector.load %arg5[%c0_11, %c0_12] : memref<1x1024xf32, #tpu.memory_space<vmem>>, vector<1x1024xf32>
      tpu.vector_store %arg5[%c0_11, %c0_12], %15 {strides = array<i32>} : memref<1x1024xf32, #tpu.memory_space<vmem>>, vector<1x1024xf32>,
    } else {
    }
    %c0 = arith.constant 0 : index
    %c0_1 = arith.constant 0 : index
    %3 = vector.load %arg2[%c0, %c0_1] : memref<2x1024xf32, #tpu.memory_space<vmem>>, vector<2x1024xf32>
    %c0_2 = arith.constant 0 : index
    %c0_3 = arith.constant 0 : index
    %4 = vector.load %arg3[%c0_2, %c0_3] : memref<2x1024xf32, #tpu.memory_space<vmem>>, vector<2x1024xf32>
    %5 = arith.subf %3, %4 : vector<2x1024xf32>
    %6 = arith.mulf %5, %5 : vector<2x1024xf32>
    %c0_4 = arith.constant 0 : index
    %c0_5 = arith.constant 0 : index
    %7 = vector.load %arg5[%c0_4, %c0_5] : memref<1x1024xf32, #tpu.memory_space<vmem>>, vector<1x1024xf32>
    %cst = arith.constant dense<0.000000e+00> : vector<1024xf32>
    %8 = vector.multi_reduction <add>, %6, %cst [0] : vector<2x1024xf32> to vector<1024xf32>
    %9 = vector.shape_cast %8 : vector<1024xf32> to vector<1x1024xf32>
    %10 = arith.addf %7, %9 : vector<1x1024xf32>
    %c0_6 = arith.constant 0 : index
    %c0_7 = arith.constant 0 : index
    %11 = vector.load %arg5[%c0_6, %c0_7] : memref<1x1024xf32, #tpu.memory_space<vmem>>, vector<1x1024xf32>
    tpu.vector_store %arg5[%c0_6, %c0_7], %10 {strides = array<i32>} : memref<1x1024xf32, #tpu.memory_space<vmem>>, vector<1x1024xf32>,
    %c0_i32_8 = arith.constant 0 : i32
    %12 = arith.cmpi eq, %arg1, %c0_i32_8 : i32
    %13 = arith.extui %12 : i1 to i32
    %c0_i32_9 = arith.constant 0 : i32
    %14 = arith.cmpi ne, %13, %c0_i32_9 : i32
    scf.if %14 {
      %c0_10 = arith.constant 0 : index
      %c0_11 = arith.constant 0 : index
      %15 = vector.load %arg5[%c0_10, %c0_11] : memref<1x1024xf32, #tpu.memory_space<vmem>>, vector<1x1024xf32>
      %16 = vector.shape_cast %15 : vector<1x1024xf32> to vector<1x1x1024xf32>
      %cst_12 = arith.constant dense<0.000000e+00> : vector<1xf32>
      %17 = vector.multi_reduction <add>, %16, %cst_12 [1, 2] : vector<1x1x1024xf32> to vector<1xf32>
      %18 = vector.shape_cast %17 : vector<1xf32> to vector<1x1x1xf32>
      %19 = vector.extract %18[0, 0, 0] : f32 from vector<1x1x1xf32>
      %cst_13 = arith.constant 4.8828125E-4 : f32
      %20 = arith.mulf %19, %cst_13 : f32
      %21 = vector.broadcast %20 : f32 to vector<1x1x1xf32>
      %c0_14 = arith.constant 0 : index
      %c0_15 = arith.constant 0 : index
      %c0_16 = arith.constant 0 : index
      %22 = vector.load %arg4[%c0_14, %c0_15, %c0_16] : memref<1x1x1xf32, #tpu.memory_space<vmem>>, vector<1x1x1xf32>
      tpu.vector_store %arg4[%c0_14, %c0_15, %c0_16], %21 {strides = array<i32>} : memref<1x1x1xf32, #tpu.memory_space<vmem>>, vector<1x1x1xf32>,
    } else {
    }
    return
  }
  func.func @transform_0(%arg0: i32, %arg1: i32) -> (i32, i32) {
    %c1_i32 = arith.constant 1 : i32
    %0 = arith.muli %arg0, %c1_i32 : i32
    %1 = arith.addi %0, %arg1 : i32
    %c0_i32 = arith.constant 0 : i32
    %2 = arith.minsi %1, %c0_i32 : i32
    %c0_i32_0 = arith.constant 0 : i32
    %c0_i32_1 = arith.constant 0 : i32
    return %2, %c0_i32_0 : i32, i32
  }
  func.func @transform_1(%arg0: i32, %arg1: i32) -> (i32, i32) {
    %c1_i32 = arith.constant 1 : i32
    %0 = arith.muli %arg0, %c1_i32 : i32
    %1 = arith.addi %0, %arg1 : i32
    %c0_i32 = arith.constant 0 : i32
    %2 = arith.minsi %1, %c0_i32 : i32
    %c0_i32_0 = arith.constant 0 : i32
    %c0_i32_1 = arith.constant 0 : i32
    return %2, %c0_i32_0 : i32, i32
  }
  func.func @transform_2(%arg0: i32, %arg1: i32) -> (i32, i32, i32) {
    %c0_i32 = arith.constant 0 : i32
    %c0_i32_0 = arith.constant 0 : i32
    %c0_i32_1 = arith.constant 0 : i32
    return %arg0, %c0_i32, %c0_i32_0 : i32, i32, i32
  }
}

</mosaic_0001>

<llo_original>
// kernel: tpu_custom_call.1
$region0: #{tpu_custom_call.1}
  #allocation0 [shape = 'u32[]', space=smem, size = 0x4, offset = 0x4, fixed_abs, tag = 'smem constant byte address 0x4 - core index']
  #allocation1 [shape = 'u32[144,128]{1,0:T(1,128)}', space=vmem, size = 0x12000, scoped, tag = 'internal scratch']
  #allocation2 [shape = 'f32[1,1024]{1,0:T(1,128)}', space=vmem, size = 0x1000, scoped, tag = 'scratch operand']
  %s0 = inlined_call_operand.hbm [shape: f32[2,1024], index: 0, kind: input, shape index: {}]
  %s1 = inlined_call_operand.hbm [shape: f32[2,1024], index: 1, kind: input, shape index: {}]
  %s2 = inlined_call_operand.hbm [shape: f32[1,1,1], index: 2, kind: output, shape index: {}]
  %s3 = sld [smem:[#allocation0]]
  $region34: #{tpu_custom_call.1} parent=0
    _
  %s5 = ssub.s32 1, %s3
  %s6 = scalar_select 0, %s5, %s3
  $region1: #{tpu_custom_call.1} parent=0
    #allocation3 [shape = 'u8[8192]{0}', space=vmem, size = 0x2000, scoped, tag = 'input window, operand 0, single buffered']
    #allocation4 [shape = 's32[1]{0}', space=sflag, size = 0x4, scoped, tag = 'scoped memory for tpu_custom_call.1']
    #allocation5 [shape = 's32[1]{0}', space=sflag, size = 0x4, scoped, tag = 'scoped memory for tpu_custom_call.1']
    #allocation6 [shape = 'u8[8192]{0}', space=vmem, size = 0x2000, scoped, tag = 'input window, operand 1, single buffered']
    #allocation7 [shape = 's32[1]{0}', space=sflag, size = 0x4, scoped, tag = 'scoped memory for tpu_custom_call.1']
    #allocation8 [shape = 'u8[512]{0}', space=vmem, size = 0x400, scoped, tag = 'output window, operand 0, single buffered']
    %7 = vsyncpa [#allocation4], 0
    %8 = vsyncpa [#allocation7], 0
    %9 = vsyncpa [#allocation5], 0
    // Predicated region
    $region2: #{tpu_custom_call.1} parent=1 // pred_check
      _
    $region3: #{tpu_custom_call.1} parent=1 // pred_check_branch
      %11 = sbr.rel (0) target = $region5
    $region4: #{tpu_custom_call.1} parent=1 // pred_region
      %s12 = sadd.s32 0, 0
      %p13 = scmp.lt.s32.totalorder %s12, 0
      %s14 = scalar_select %p13, %s12, 0
      %s16 = ssub.s32 256, 256
      %17 = vsyncadd [#allocation4], %s16
      %s18 = smul.addr %s14, 8
      %s19 = smul.addr %s18, 32
      %s20 = scalar_lea.hbm %s0, %s19
      %s22 = sshll.u32 [#allocation3], 4
      %s23 = int_to_ptr.vmem [resolvable:$true] %s22
      %25 = dma.hbm_to_vmem [thread:$0]  %s20, 256, %s23, [#allocation4]
    $region5: #{tpu_custom_call.1} parent=1 // pred_fallthru
      _
    // Predicated region
    $region6: #{tpu_custom_call.1} parent=1 // pred_check
      _
    $region7: #{tpu_custom_call.1} parent=1 // pred_check_branch
      %27 = sbr.rel (0) target = $region9
    $region8: #{tpu_custom_call.1} parent=1 // pred_region
      %s28 = sadd.s32 0, 0
      %p29 = scmp.lt.s32.totalorder %s28, 0
      %s30 = scalar_select %p29, %s28, 0
      %s32 = ssub.s32 256, 256
      %33 = vsyncadd [#allocation7], %s32
      %s34 = smul.addr %s30, 8
      %s35 = smul.addr %s34, 32
      %s36 = scalar_lea.hbm %s1, %s35
      %s38 = sshll.u32 [#allocation6], 4
      %s39 = int_to_ptr.vmem [resolvable:$true] %s38
      %41 = dma.hbm_to_vmem [thread:$0]  %s36, 256, %s39, [#allocation7]
    $region9: #{tpu_custom_call.1} parent=1 // pred_fallthru
      _
    // Predicated region
    $region10: #{tpu_custom_call.1} parent=1 // pred_check
      _
    $region11: #{tpu_custom_call.1} parent=1 // pred_check_branch
      %43 = sbr.rel (0) target = $region13
    $region12: #{tpu_custom_call.1} parent=1 // pred_region
      %44 = dma.done [#allocation4], 256
    $region13: #{tpu_custom_call.1} parent=1 // pred_fallthru
      _
    // Predicated region
    $region14: #{tpu_custom_call.1} parent=1 // pred_check
      _
    $region15: #{tpu_custom_call.1} parent=1 // pred_check_branch
      %46 = sbr.rel (0) target = $region17
    $region16: #{tpu_custom_call.1} parent=1 // pred_region
      %47 = dma.done [#allocation7], 256
    $region17: #{tpu_custom_call.1} parent=1 // pred_fallthru
      _
    %s48 = sadd.s32 0, 0
    %p49 = scmp.lt.s32.totalorder %s48, 0
    %s50 = scalar_select %p49, %s48, 0
    %s51 = sadd.s32 0, 0
    %p52 = scmp.lt.s32.totalorder %s51, 0
    %s53 = scalar_select %p52, %s51, 0
    %p54 = scmp.eq.s32.totalorder 0, 0
    // Predicated region
    $region18: #{tpu_custom_call.1} parent=1 // pred_check
      %p55 = pneg %p54
    $region19: #{tpu_custom_call.1} parent=1 // pred_check_branch
      %57 = sbr.rel (%p55) target = $region21
    $region20: #{tpu_custom_call.1} parent=1 // pred_region
      %58 = vst [vmem:[#allocation2] sm:$0xff] 0.0
    $region21: #{tpu_custom_call.1} parent=1 // pred_fallthru
      _
    %v59 = vld [vmem:[#allocation3] sm:$0xff]
    %v60 = vld [vmem:[#allocation3 + $0x8] sm:$0xff]
    %v61 = vld [vmem:[#allocation6] sm:$0xff]
    %v62 = vld [vmem:[#allocation6 + $0x8] sm:$0xff]
    %v63 = vsub.f32 %v59, %v61
    %v64 = vsub.f32 %v60, %v62
    %v65 = vmul.f32 %v63, %v63
    %v66 = vmul.f32 %v64, %v64
    %v67 = vld [vmem:[#allocation2] sm:$0xff]
    %v70 = vcombine.high %v65, %v65
    %v72 = vunpack.c.l.s4 1983009808
    %v73 = vunpack.c.0.s8 %v72
    %v74 = vlaneseq
    %v75 = vshrl.u32 %v74, 7
    %v76 = vsub.s32 %v73, %v75
    %v77 = vrot.slane %v65, %v76
    %v79 = vunpack.c.l.s4 1983009808
    %v80 = vunpack.c.0.s8 %v79
    %v81 = vlaneseq
    %v82 = vshrl.u32 %v81, 7
    %v83 = vsub.s32 %v80, %v82
    %v84 = vrot.slane %v70, %v83
    %v85 = vcombine.high %v77, %v77
    %v86 = vcombine.high %v84, %v84
    %v87 = vcombine.high %v66, %v66
    %v89 = vunpack.c.l.s4 1983009808
    %v90 = vunpack.c.0.s8 %v89
    %v91 = vlaneseq
    %v92 = vshrl.u32 %v91, 7
    %v93 = vsub.s32 %v90, %v92
    %v94 = vrot.slane %v66, %v93
    %v96 = vunpack.c.l.s4 1983009808
    %v97 = vunpack.c.0.s8 %v96
    %v98 = vlaneseq
    %v99 = vshrl.u32 %v98, 7
    %v100 = vsub.s32 %v97, %v99
    %v101 = vrot.slane %v87, %v100
    %v102 = vcombine.high %v94, %v94
    %v103 = vcombine.high %v101, %v101
    %vm112 = vcmask 1041408
    %v113 = vsel %vm112, %v77, 0.0
    %v114 = vrot.slane %v113, 4
    %v115 = vadd.f32 %v113, %v114
    %v116 = vrot.slane %v115, 2
    %v117 = vadd.f32 %v115, %v116
    %v118 = vrot.slane %v117, 1
    %v119 = vadd.f32 %v117, %v118
    %v120 = vsel %vm112, %v85, 0.0
    %v121 = vrot.slane %v120, 4
    %v122 = vadd.f32 %v120, %v121
    %v123 = vrot.slane %v122, 2
    %v124 = vadd.f32 %v122, %v123
    %v125 = vrot.slane %v124, 1
    %v126 = vadd.f32 %v124, %v125
    %v127 = vsel %vm112, %v84, 0.0
    %v128 = vrot.slane %v127, 4
    %v129 = vadd.f32 %v127, %v128
    %v130 = vrot.slane %v129, 2
    %v131 = vadd.f32 %v129, %v130
    %v132 = vrot.slane %v131, 1
    %v133 = vadd.f32 %v131, %v132
    %v134 = vsel %vm112, %v86, 0.0
    %v135 = vrot.slane %v134, 4
    %v136 = vadd.f32 %v134, %v135
    %v137 = vrot.slane %v136, 2
    %v138 = vadd.f32 %v136, %v137
    %v139 = vrot.slane %v138, 1
    %v140 = vadd.f32 %v138, %v139
    %v141 = vsel %vm112, %v94, 0.0
    %v142 = vrot.slane %v141, 4
    %v143 = vadd.f32 %v141, %v142
    %v144 = vrot.slane %v143, 2
    %v145 = vadd.f32 %v143, %v144
    %v146 = vrot.slane %v145, 1
    %v147 = vadd.f32 %v145, %v146
    %v148 = vsel %vm112, %v102, 0.0
    %v149 = vrot.slane %v148, 4
    %v150 = vadd.f32 %v148, %v149
    %v151 = vrot.slane %v150, 2
    %v152 = vadd.f32 %v150, %v151
    %v153 = vrot.slane %v152, 1
    %v154 = vadd.f32 %v152, %v153
    %v155 = vsel %vm112, %v101, 0.0
    %v156 = vrot.slane %v155, 4
    %v157 = vadd.f32 %v155, %v156
    %v158 = vrot.slane %v157, 2
    %v159 = vadd.f32 %v157, %v158
    %v160 = vrot.slane %v159, 1
    %v161 = vadd.f32 %v159, %v160
    %v162 = vsel %vm112, %v103, 0.0
    %v163 = vrot.slane %v162, 4
    %v164 = vadd.f32 %v162, %v163
    %v165 = vrot.slane %v164, 2
    %v166 = vadd.f32 %v164, %v165
    %v167 = vrot.slane %v166, 1
    %v168 = vadd.f32 %v166, %v167
    %v177 = vcombine.low %v119, %v126
    %v178 = vcombine.low %v133, %v140
    %v179 = vcombine.low %v147, %v154
    %v180 = vcombine.low %v161, %v168
    %v182 = vunpack.c.l.s4 1966171168
    %v183 = vunpack.c.0.s8 %v182
    %v184 = vlaneseq
    %v185 = vshrl.u32 %v184, 7
    %v186 = vsub.s32 %v183, %v185
    %v187 = vrot.slane %v177, %v186
    %v189 = vunpack.c.l.s4 1966171168
    %v190 = vunpack.c.0.s8 %v189
    %v191 = vlaneseq
    %v192 = vshrl.u32 %v191, 7
    %v193 = vsub.s32 %v190, %v192
    %v194 = vrot.slane %v178, %v193
    %v196 = vunpack.c.l.s4 1966171168
    %v197 = vunpack.c.0.s8 %v196
    %v198 = vlaneseq
    %v199 = vshrl.u32 %v198, 7
    %v200 = vsub.s32 %v197, %v199
    %v201 = vrot.slane %v179, %v200
    %v203 = vunpack.c.l.s4 1966171168
    %v204 = vunpack.c.0.s8 %v203
    %v205 = vlaneseq
    %v206 = vshrl.u32 %v205, 7
    %v207 = vsub.s32 %v204, %v206
    %v208 = vrot.slane %v180, %v207
    %v209 = vcombine.low %v187, %v194
    %v210 = vcombine.low %v201, %v208
    %v212 = vunpack.c.l.s4 1966171168
    %v213 = vunpack.c.0.s8 %v212
    %v214 = vlaneseq
    %v215 = vshrl.u32 %v214, 7
    %v216 = vsub.s32 %v213, %v215
    %v217 = vrot.slane %v209, %v216
    %v219 = vunpack.c.l.s4 1966171168
    %v220 = vunpack.c.0.s8 %v219
    %v221 = vlaneseq
    %v222 = vshrl.u32 %v221, 7
    %v223 = vsub.s32 %v220, %v222
    %v224 = vrot.slane %v210, %v223
    %v225 = vcombine.low %v217, %v224
    %v227 = vadd.f32 %v67, %v225
    %228 = vst [vmem:[#allocation2] sm:$0xff] %v227
    // Predicated region
    $region22: #{tpu_custom_call.1} parent=1 // pred_check
      %p229 = pneg %p54
    $region23: #{tpu_custom_call.1} parent=1 // pred_check_branch
      %231 = sbr.rel (%p229) target = $region25
    $region24: #{tpu_custom_call.1} parent=1 // pred_region
      %v232 = vld [vmem:[#allocation2] sm:$0xff]
      %v234 = vlaneseq
      %v235 = vshrl.u32 %v234, 7
      %v236 = vsub.s32 0, %v235
      %v237 = vrot.slane %v232, %v236
      %v238 = vlaneseq
      %v239 = vshrl.u32 %v238, 7
      %v240 = vsub.s32 1, %v239
      %v241 = vrot.slane %v232, %v240
      %v242 = vlaneseq
      %v243 = vshrl.u32 %v242, 7
      %v244 = vsub.s32 2, %v243
      %v245 = vrot.slane %v232, %v244
      %v246 = vlaneseq
      %v247 = vshrl.u32 %v246, 7
      %v248 = vsub.s32 3, %v247
      %v249 = vrot.slane %v232, %v248
      %v250 = vlaneseq
      %v251 = vshrl.u32 %v250, 7
      %v252 = vsub.s32 4, %v251
      %v253 = vrot.slane %v232, %v252
      %v254 = vlaneseq
      %v255 = vshrl.u32 %v254, 7
      %v256 = vsub.s32 5, %v255
      %v257 = vrot.slane %v232, %v256
      %v258 = vlaneseq
      %v259 = vshrl.u32 %v258, 7
      %v260 = vsub.s32 6, %v259
      %v261 = vrot.slane %v232, %v260
      %v262 = vlaneseq
      %v263 = vshrl.u32 %v262, 7
      %v264 = vsub.s32 7, %v263
      %v265 = vrot.slane %v232, %v264
      %vm274 = vcmask 1040384
      %v275 = vsel %vm274, %v237, 0.0
      %v276 = vsel %vm274, %v241, 0.0
      %v277 = vadd.f32 %v275, %v276
      %v278 = vsel %vm274, %v245, 0.0
      %v279 = vadd.f32 %v277, %v278
      %v280 = vsel %vm274, %v249, 0.0
      %v281 = vadd.f32 %v279, %v280
      %v282 = vsel %vm274, %v253, 0.0
      %v283 = vadd.f32 %v281, %v282
      %v284 = vsel %vm274, %v257, 0.0
      %v285 = vadd.f32 %v283, %v284
      %v286 = vsel %vm274, %v261, 0.0
      %v287 = vadd.f32 %v285, %v286
      %v288 = vsel %vm274, %v265, 0.0
      %v289 = vadd.f32 %v287, %v288
      %290 = vadd.xlane.f32.xlu0 %v289
      %v291 = vpop.xlane.xlu0 %290
      %v292 = vrot.slane %v291, 4
      %v293 = vadd.f32 %v291, %v292
      %v294 = vrot.slane %v293, 2
      %v295 = vadd.f32 %v293, %v294
      %v296 = vrot.slane %v295, 1
      %v297 = vadd.f32 %v295, %v296
      %s298 = vtos %v297
      %s299 = smul.f32 %s298, 0.00048828125
      %v300 = vstv %s299
      %vm301 = vcmask 0
      %302 = vst.msk [vmem:[#allocation8] sm:$0x1] %vm301, %v300
    $region25: #{tpu_custom_call.1} parent=1 // pred_fallthru
      _
    // Predicated region
    $region26: #{tpu_custom_call.1} parent=1 // pred_check
      _
    $region27: #{tpu_custom_call.1} parent=1 // pred_check_branch
      %304 = sbr.rel (0) target = $region29
    $region28: #{tpu_custom_call.1} parent=1 // pred_region
      %s306 = ssub.s32 16, 16
      %307 = vsyncadd [#allocation5], %s306
      %s309 = sshll.u32 [#allocation8], 4
      %s310 = int_to_ptr.vmem [resolvable:$true] %s309
      %312 = dma.vmem_to_hbm [thread:$0]  %s310, 16, %s2, [#allocation5]
    $region29: #{tpu_custom_call.1} parent=1 // pred_fallthru
      _
    // Predicated region
    $region30: #{tpu_custom_call.1} parent=1 // pred_check
      _
    $region31: #{tpu_custom_call.1} parent=1 // pred_check_branch
      %314 = sbr.rel (0) target = $region33
    $region32: #{tpu_custom_call.1} parent=1 // pred_region
      %315 = dma.done [#allocation5], 16
    $region33: #{tpu_custom_call.1} parent=1 // pred_fallthru
      _
    %316 = vsyncpa [#allocation4], 1
    %317 = vsyncpa [#allocation7], 1
    %318 = vsyncpa [#allocation5], 1

</llo_original>
